<compile_context>
chip_gen: v7x
topology: tpu7x:2x2x1
jax: 0.10.0
libtpu: 0.0.40
codegen_flags: <defaults>
</compile_context>

<pallas_src>
import jax
import jax.numpy as jnp
from jax import lax
from jax.experimental import pallas as pl
from jax.experimental.pallas import tpu as pltpu

_LANES = 128


def _mlp_kernel(x_ref,
                w1_ref, b1_ref,
                w2_ref, b2_ref,
                w3_ref, b3_ref,
                w4_ref, b4_ref,
                w5_ref, b5_ref,
                wf_ref, bf_ref,
                o_ref):
    """Fused forward with batch on the lane axis.

    x_ref:  [TB, K]   f32   (cast to bf16 in-kernel)
    w*_ref: [out, in] bf16  (PyTorch layout, VMEM-resident)
    b*_ref: [out, 1]  f32
    wf_ref: [H, 1]    f32
    bf_ref: [1, 1]    f32
    o_ref:  [1, TB]   f32   (lane-dense output strip)
    """
    xb = x_ref[...].astype(jnp.bfloat16)                     # [TB, K]

    # Layer 1: contract the feature axis of both operands (trans-B form), so
    # no transpose of x is materialized.  [H, K] x [TB, K] -> [H, TB], f32 acc.
    h = lax.dot_general(w1_ref[...], xb,
                        dimension_numbers=(((1,), (1,)), ((), ())),
                        preferred_element_type=jnp.float32)
    h = jnp.maximum(h + b1_ref[...], 0.0)                    # f32 [H, TB]

    def linear_relu(h_f32, w_ref, b_ref):
        # MXU matmul (bf16 in, f32 acc); bias + ReLU stay in f32 (safe on v5e,
        # which has no bf16 VPU).
        hb = h_f32.astype(jnp.bfloat16)                      # [H, TB]
        y = jnp.dot(w_ref[...], hb,
                    preferred_element_type=jnp.float32)      # [H, TB]
        return jnp.maximum(y + b_ref[...], 0.0)

    h = linear_relu(h, w2_ref, b2_ref)
    h = linear_relu(h, w3_ref, b3_ref)
    h = linear_relu(h, w4_ref, b4_ref)
    h = linear_relu(h, w5_ref, b5_ref)                       # f32 [H, TB]

    # Final Linear(H -> 1): an M=1/N=1 matmul would waste the MXU, so do it as
    # a VPU multiply + cross-sublane (XLU) reduce in f32.
    y = jnp.sum(h * wf_ref[...], axis=0, keepdims=True) + bf_ref[...]   # [1, TB]
    o_ref[...] = y.astype(o_ref.dtype)


def _round_up(n, m):
    return ((n + m - 1) // m) * m


def mlp_forward(x, params, block_b=512):
    """x: [B, input_shape] f32.  params: list of (W[out, in], b[out]) (PyTorch layout)."""
    B, K = x.shape
    H = params[0][0].shape[0]

    # Batch tile lives on the lane axis -> must be a multiple of 128.
    tb = min(_round_up(block_b, _LANES), _round_up(B, _LANES))
    b_pad = _round_up(B, tb)
    if b_pad != B:
        x = jnp.pad(x, ((0, b_pad - B), (0, 0)))

    # Hidden layers: bf16 weights for the MXU, f32 column biases.
    flat = []
    for (w, b) in params[:-1]:
        flat.append(w.astype(jnp.bfloat16))
        flat.append(b.reshape(-1, 1).astype(jnp.float32))
    wf, bf = params[-1]                                   # [1, H], [1]
    wf_col = wf.reshape(H, 1).astype(jnp.float32)
    bf_sc = bf.reshape(1, 1).astype(jnp.float32)

    grid = (b_pad // tb,)

    def _resident(shape):
        # Full-array block with a constant index_map: DMA'd into VMEM once and
        # kept resident across all batch tiles.
        return pl.BlockSpec(shape, lambda i, _nd=len(shape): (0,) * _nd)

    in_specs = [pl.BlockSpec((tb, K), lambda i: (i, 0))]
    in_specs += [_resident(a.shape) for a in flat]
    in_specs += [_resident(wf_col.shape), _resident(bf_sc.shape)]
    out_specs = pl.BlockSpec((1, tb), lambda i: (0, i))

    flops = 2 * b_pad * (K * H + 4 * H * H + H)
    bytes_accessed = (x.size * 4
                      + sum(a.size * a.dtype.itemsize for a in flat)
                      + wf_col.size * 4 + bf_sc.size * 4
                      + b_pad * 4)

    out = pl.pallas_call(
        _mlp_kernel,
        out_shape=jax.ShapeDtypeStruct((1, b_pad), jnp.float32),
        grid=grid,
        in_specs=in_specs,
        out_specs=out_specs,
        compiler_params=pltpu.CompilerParams(
            dimension_semantics=("parallel",),
            vmem_limit_bytes=64 << 20),
        cost_estimate=pl.CostEstimate(
            flops=flops, transcendentals=0, bytes_accessed=bytes_accessed),
    )(x, *flat, wf_col, bf_sc)

    # Valid rows -> [B]; matches torch.squeeze on a [B, 1] result.
    return jnp.squeeze(out[0, :B])


def init_params(key, input_shape, hidden_layer_width):
    """Deterministic init mimicking torch.nn.Linear (uniform +-1/sqrt(fan_in)).

    Weights stored in PyTorch layout [out, in]; biases as [out]."""
    dims = [(hidden_layer_width, input_shape)] + \
           [(hidden_layer_width, hidden_layer_width)] * 4 + \
           [(1, hidden_layer_width)]
    params = []
    for (fan_out, fan_in) in dims:
        key, kw, kb = jax.random.split(key, 3)
        bound = 1.0 / (fan_in ** 0.5)
        w = jax.random.uniform(kw, (fan_out, fan_in), jnp.float32, -bound, bound)
        b = jax.random.uniform(kb, (fan_out,), jnp.float32, -bound, bound)
        params.append((w, b))
    return params


if __name__ == "__main__":
    key = jax.random.PRNGKey(0)
    batch = 200             # padded to 256 -> exercises padding and a 2-step grid
    input_shape = 16
    hidden_layer_width = 32

    key, kx = jax.random.split(key)
    x = jax.random.normal(kx, (batch, input_shape), jnp.float32)

    params = init_params(key, input_shape, hidden_layer_width)

    y = mlp_forward(x, params, block_b=128)
    jax.block_until_ready(y)

    # Pure-JAX reference on the same bf16-matmul / f32-accumulate path.
    h = x
    for (w, b) in params[:-1]:
        a = jnp.dot(h.astype(jnp.bfloat16), w.T.astype(jnp.bfloat16),
                    preferred_element_type=jnp.float32) + b
        h = jnp.maximum(a, 0.0)
    wf, bf = params[-1]
    y_ref = jnp.squeeze(jnp.dot(h, wf.T) + bf)

    assert y.shape == (batch,), y.shape
    assert jnp.allclose(y, y_ref, atol=2e-3, rtol=2e-3)

    print("KERNEL_OK")
</pallas_src>

<mosaic_0001>
module attributes {stable_mosaic.version = 11 : i64} {
  func.func @_mlp_kernel(%arg0: i32, %arg1: memref<128x16xf32, #tpu.memory_space<vmem>>, %arg2: memref<32x16xbf16, #tpu.memory_space<vmem>>, %arg3: memref<32x1xf32, #tpu.memory_space<vmem>>, %arg4: memref<32x32xbf16, #tpu.memory_space<vmem>>, %arg5: memref<32x1xf32, #tpu.memory_space<vmem>>, %arg6: memref<32x32xbf16, #tpu.memory_space<vmem>>, %arg7: memref<32x1xf32, #tpu.memory_space<vmem>>, %arg8: memref<32x32xbf16, #tpu.memory_space<vmem>>, %arg9: memref<32x1xf32, #tpu.memory_space<vmem>>, %arg10: memref<32x32xbf16, #tpu.memory_space<vmem>>, %arg11: memref<32x1xf32, #tpu.memory_space<vmem>>, %arg12: memref<32x1xf32, #tpu.memory_space<vmem>>, %arg13: memref<1x1xf32, #tpu.memory_space<vmem>>, %arg14: memref<1x128xf32, #tpu.memory_space<vmem>>) attributes {dimension_semantics = [#tpu.dimension_semantics<parallel>], iteration_bounds = array<i64: 2>, scalar_prefetch = 0 : i64, scratch_operands = 0 : i64, tpu.core_type = #tpu.core_type<tc>, window_params = [{transform_indices = @transform_0, window_bounds = array<i64: 128, 16>}, {pipeline_mode = #tpu.pipeline_mode<synchronous>, transform_indices = @transform_1, window_bounds = array<i64: 32, 16>}, {pipeline_mode = #tpu.pipeline_mode<synchronous>, transform_indices = @transform_2, window_bounds = array<i64: 32, 1>}, {pipeline_mode = #tpu.pipeline_mode<synchronous>, transform_indices = @transform_3, window_bounds = array<i64: 32, 32>}, {pipeline_mode = #tpu.pipeline_mode<synchronous>, transform_indices = @transform_4, window_bounds = array<i64: 32, 1>}, {pipeline_mode = #tpu.pipeline_mode<synchronous>, transform_indices = @transform_5, window_bounds = array<i64: 32, 32>}, {pipeline_mode = #tpu.pipeline_mode<synchronous>, transform_indices = @transform_6, window_bounds = array<i64: 32, 1>}, {pipeline_mode = #tpu.pipeline_mode<synchronous>, transform_indices = @transform_7, window_bounds = array<i64: 32, 32>}, {pipeline_mode = #tpu.pipeline_mode<synchronous>, transform_indices = @transform_8, window_bounds = array<i64: 32, 1>}, {pipeline_mode = #tpu.pipeline_mode<synchronous>, transform_indices = @transform_9, window_bounds = array<i64: 32, 32>}, {pipeline_mode = #tpu.pipeline_mode<synchronous>, transform_indices = @transform_10, window_bounds = array<i64: 32, 1>}, {pipeline_mode = #tpu.pipeline_mode<synchronous>, transform_indices = @transform_11, window_bounds = array<i64: 32, 1>}, {pipeline_mode = #tpu.pipeline_mode<synchronous>, transform_indices = @transform_12, window_bounds = array<i64: 1, 1>}, {transform_indices = @transform_13, window_bounds = array<i64: 1, 128>}]} {
    %c0 = arith.constant 0 : index
    %c0_0 = arith.constant 0 : index
    %0 = vector.load %arg1[%c0, %c0_0] : memref<128x16xf32, #tpu.memory_space<vmem>>, vector<128x16xf32>
    %1 = arith.truncf %0 : vector<128x16xf32> to vector<128x16xbf16>
    %c0_1 = arith.constant 0 : index
    %c0_2 = arith.constant 0 : index
    %2 = vector.load %arg2[%c0_1, %c0_2] : memref<32x16xbf16, #tpu.memory_space<vmem>>, vector<32x16xbf16>
    %cst = arith.constant dense<0.000000e+00> : vector<32x128xf32>
    %3 = tpu.matmul %2, %1, %cst {dimension_numbers = #tpu.dot_dimension_numbers<[1], [1], [0], [0], [0, 0, 1, 0], [], []>} : vector<32x16xbf16>, vector<128x16xbf16>, vector<32x128xf32> -> vector<32x128xf32>
    %c0_3 = arith.constant 0 : index
    %c0_4 = arith.constant 0 : index
    %4 = vector.load %arg3[%c0_3, %c0_4] : memref<32x1xf32, #tpu.memory_space<vmem>>, vector<32x1xf32>
    %5 = vector.broadcast %4 : vector<32x1xf32> to vector<32x128xf32>
    %6 = arith.addf %3, %5 : vector<32x128xf32>
    %cst_5 = arith.constant 0.000000e+00 : f32
    %7 = vector.broadcast %cst_5 : f32 to vector<32x128xf32>
    %8 = arith.maximumf %6, %7 : vector<32x128xf32>
    %9 = arith.truncf %8 : vector<32x128xf32> to vector<32x128xbf16>
    %c0_6 = arith.constant 0 : index
    %c0_7 = arith.constant 0 : index
    %10 = vector.load %arg4[%c0_6, %c0_7] : memref<32x32xbf16, #tpu.memory_space<vmem>>, vector<32x32xbf16>
    %cst_8 = arith.constant dense<0.000000e+00> : vector<32x128xf32>
    %11 = tpu.matmul %10, %9, %cst_8 {dimension_numbers = #tpu.dot_dimension_numbers<[1], [0], [0], [1], [0, 0, 1, 1], [], []>} : vector<32x32xbf16>, vector<32x128xbf16>, vector<32x128xf32> -> vector<32x128xf32>
    %c0_9 = arith.constant 0 : index
    %c0_10 = arith.constant 0 : index
    %12 = vector.load %arg5[%c0_9, %c0_10] : memref<32x1xf32, #tpu.memory_space<vmem>>, vector<32x1xf32>
    %13 = vector.broadcast %12 : vector<32x1xf32> to vector<32x128xf32>
    %14 = arith.addf %11, %13 : vector<32x128xf32>
    %cst_11 = arith.constant 0.000000e+00 : f32
    %15 = vector.broadcast %cst_11 : f32 to vector<32x128xf32>
    %16 = arith.maximumf %14, %15 : vector<32x128xf32>
    %17 = arith.truncf %16 : vector<32x128xf32> to vector<32x128xbf16>
    %c0_12 = arith.constant 0 : index
    %c0_13 = arith.constant 0 : index
    %18 = vector.load %arg6[%c0_12, %c0_13] : memref<32x32xbf16, #tpu.memory_space<vmem>>, vector<32x32xbf16>
    %cst_14 = arith.constant dense<0.000000e+00> : vector<32x128xf32>
    %19 = tpu.matmul %18, %17, %cst_14 {dimension_numbers = #tpu.dot_dimension_numbers<[1], [0], [0], [1], [0, 0, 1, 1], [], []>} : vector<32x32xbf16>, vector<32x128xbf16>, vector<32x128xf32> -> vector<32x128xf32>
    %c0_15 = arith.constant 0 : index
    %c0_16 = arith.constant 0 : index
    %20 = vector.load %arg7[%c0_15, %c0_16] : memref<32x1xf32, #tpu.memory_space<vmem>>, vector<32x1xf32>
    %21 = vector.broadcast %20 : vector<32x1xf32> to vector<32x128xf32>
    %22 = arith.addf %19, %21 : vector<32x128xf32>
    %cst_17 = arith.constant 0.000000e+00 : f32
    %23 = vector.broadcast %cst_17 : f32 to vector<32x128xf32>
    %24 = arith.maximumf %22, %23 : vector<32x128xf32>
    %25 = arith.truncf %24 : vector<32x128xf32> to vector<32x128xbf16>
    %c0_18 = arith.constant 0 : index
    %c0_19 = arith.constant 0 : index
    %26 = vector.load %arg8[%c0_18, %c0_19] : memref<32x32xbf16, #tpu.memory_space<vmem>>, vector<32x32xbf16>
    %cst_20 = arith.constant dense<0.000000e+00> : vector<32x128xf32>
    %27 = tpu.matmul %26, %25, %cst_20 {dimension_numbers = #tpu.dot_dimension_numbers<[1], [0], [0], [1], [0, 0, 1, 1], [], []>} : vector<32x32xbf16>, vector<32x128xbf16>, vector<32x128xf32> -> vector<32x128xf32>
    %c0_21 = arith.constant 0 : index
    %c0_22 = arith.constant 0 : index
    %28 = vector.load %arg9[%c0_21, %c0_22] : memref<32x1xf32, #tpu.memory_space<vmem>>, vector<32x1xf32>
    %29 = vector.broadcast %28 : vector<32x1xf32> to vector<32x128xf32>
    %30 = arith.addf %27, %29 : vector<32x128xf32>
    %cst_23 = arith.constant 0.000000e+00 : f32
    %31 = vector.broadcast %cst_23 : f32 to vector<32x128xf32>
    %32 = arith.maximumf %30, %31 : vector<32x128xf32>
    %33 = arith.truncf %32 : vector<32x128xf32> to vector<32x128xbf16>
    %c0_24 = arith.constant 0 : index
    %c0_25 = arith.constant 0 : index
    %34 = vector.load %arg10[%c0_24, %c0_25] : memref<32x32xbf16, #tpu.memory_space<vmem>>, vector<32x32xbf16>
    %cst_26 = arith.constant dense<0.000000e+00> : vector<32x128xf32>
    %35 = tpu.matmul %34, %33, %cst_26 {dimension_numbers = #tpu.dot_dimension_numbers<[1], [0], [0], [1], [0, 0, 1, 1], [], []>} : vector<32x32xbf16>, vector<32x128xbf16>, vector<32x128xf32> -> vector<32x128xf32>
    %c0_27 = arith.constant 0 : index
    %c0_28 = arith.constant 0 : index
    %36 = vector.load %arg11[%c0_27, %c0_28] : memref<32x1xf32, #tpu.memory_space<vmem>>, vector<32x1xf32>
    %37 = vector.broadcast %36 : vector<32x1xf32> to vector<32x128xf32>
    %38 = arith.addf %35, %37 : vector<32x128xf32>
    %cst_29 = arith.constant 0.000000e+00 : f32
    %39 = vector.broadcast %cst_29 : f32 to vector<32x128xf32>
    %40 = arith.maximumf %38, %39 : vector<32x128xf32>
    %c0_30 = arith.constant 0 : index
    %c0_31 = arith.constant 0 : index
    %41 = vector.load %arg12[%c0_30, %c0_31] : memref<32x1xf32, #tpu.memory_space<vmem>>, vector<32x1xf32>
    %42 = vector.broadcast %41 : vector<32x1xf32> to vector<32x128xf32>
    %43 = arith.mulf %40, %42 : vector<32x128xf32>
    %cst_32 = arith.constant dense<0.000000e+00> : vector<128xf32>
    %44 = vector.multi_reduction <add>, %43, %cst_32 [0] : vector<32x128xf32> to vector<128xf32>
    %45 = vector.shape_cast %44 : vector<128xf32> to vector<1x128xf32>
    %c0_33 = arith.constant 0 : index
    %c0_34 = arith.constant 0 : index
    %46 = vector.load %arg13[%c0_33, %c0_34] : memref<1x1xf32, #tpu.memory_space<vmem>>, vector<1x1xf32>
    %47 = vector.broadcast %46 : vector<1x1xf32> to vector<1x128xf32>
    %48 = arith.addf %45, %47 : vector<1x128xf32>
    %c0_35 = arith.constant 0 : index
    %c0_36 = arith.constant 0 : index
    %49 = vector.load %arg14[%c0_35, %c0_36] : memref<1x128xf32, #tpu.memory_space<vmem>>, vector<1x128xf32>
    tpu.vector_store %arg14[%c0_35, %c0_36], %48 {strides = array<i32>} : memref<1x128xf32, #tpu.memory_space<vmem>>, vector<1x128xf32>,
    return
  }
  func.func @transform_0(%arg0: i32) -> (i32, i32) {
    %c0_i32 = arith.constant 0 : i32
    %c0_i32_0 = arith.constant 0 : i32
    return %arg0, %c0_i32 : i32, i32
  }
  func.func @transform_1(%arg0: i32) -> (i32, i32) {
    %c0_i32 = arith.constant 0 : i32
    %c0_i32_0 = arith.constant 0 : i32
    %c0_i32_1 = arith.constant 0 : i32
    return %c0_i32, %c0_i32_0 : i32, i32
  }
  func.func @transform_2(%arg0: i32) -> (i32, i32) {
    %c0_i32 = arith.constant 0 : i32
    %c0_i32_0 = arith.constant 0 : i32
    %c0_i32_1 = arith.constant 0 : i32
    return %c0_i32, %c0_i32_0 : i32, i32
  }
  func.func @transform_3(%arg0: i32) -> (i32, i32) {
    %c0_i32 = arith.constant 0 : i32
    %c0_i32_0 = arith.constant 0 : i32
    %c0_i32_1 = arith.constant 0 : i32
    return %c0_i32, %c0_i32_0 : i32, i32
  }
  func.func @transform_4(%arg0: i32) -> (i32, i32) {
    %c0_i32 = arith.constant 0 : i32
    %c0_i32_0 = arith.constant 0 : i32
    %c0_i32_1 = arith.constant 0 : i32
    return %c0_i32, %c0_i32_0 : i32, i32
  }
  func.func @transform_5(%arg0: i32) -> (i32, i32) {
    %c0_i32 = arith.constant 0 : i32
    %c0_i32_0 = arith.constant 0 : i32
    %c0_i32_1 = arith.constant 0 : i32
    return %c0_i32, %c0_i32_0 : i32, i32
  }
  func.func @transform_6(%arg0: i32) -> (i32, i32) {
    %c0_i32 = arith.constant 0 : i32
    %c0_i32_0 = arith.constant 0 : i32
    %c0_i32_1 = arith.constant 0 : i32
    return %c0_i32, %c0_i32_0 : i32, i32
  }
  func.func @transform_7(%arg0: i32) -> (i32, i32) {
    %c0_i32 = arith.constant 0 : i32
    %c0_i32_0 = arith.constant 0 : i32
    %c0_i32_1 = arith.constant 0 : i32
    return %c0_i32, %c0_i32_0 : i32, i32
  }
  func.func @transform_8(%arg0: i32) -> (i32, i32) {
    %c0_i32 = arith.constant 0 : i32
    %c0_i32_0 = arith.constant 0 : i32
    %c0_i32_1 = arith.constant 0 : i32
    return %c0_i32, %c0_i32_0 : i32, i32
  }
  func.func @transform_9(%arg0: i32) -> (i32, i32) {
    %c0_i32 = arith.constant 0 : i32
    %c0_i32_0 = arith.constant 0 : i32
    %c0_i32_1 = arith.constant 0 : i32
    return %c0_i32, %c0_i32_0 : i32, i32
  }
  func.func @transform_10(%arg0: i32) -> (i32, i32) {
    %c0_i32 = arith.constant 0 : i32
    %c0_i32_0 = arith.constant 0 : i32
    %c0_i32_1 = arith.constant 0 : i32
    return %c0_i32, %c0_i32_0 : i32, i32
  }
  func.func @transform_11(%arg0: i32) -> (i32, i32) {
    %c0_i32 = arith.constant 0 : i32
    %c0_i32_0 = arith.constant 0 : i32
    %c0_i32_1 = arith.constant 0 : i32
    return %c0_i32, %c0_i32_0 : i32, i32
  }
  func.func @transform_12(%arg0: i32) -> (i32, i32) {
    %c0_i32 = arith.constant 0 : i32
    %c0_i32_0 = arith.constant 0 : i32
    %c0_i32_1 = arith.constant 0 : i32
    return %c0_i32, %c0_i32_0 : i32, i32
  }
  func.func @transform_13(%arg0: i32) -> (i32, i32) {
    %c0_i32 = arith.constant 0 : i32
    %c0_i32_0 = arith.constant 0 : i32
    return %c0_i32, %arg0 : i32, i32
  }
}

</mosaic_0001>

<llo_original>
// kernel: tpu_custom_call.1
$region0: #{tpu_custom_call.1}
  #allocation0 [shape = 'u32[]', space=smem, size = 0x4, offset = 0x4, fixed_abs, tag = 'smem constant byte address 0x4 - core index']
  #allocation1 [shape = 'u32[144,128]{1,0:T(1,128)}', space=vmem, size = 0x12000, scoped, tag = 'internal scratch']
  #allocation2 [shape = 'f32[1,1]{1,0:T(1,128)S(1)}', space=vmem, size = 0x200, scoped, tag = 'scoped memory for tpu_custom_call.1']
  %s0 = inlined_call_operand.hbm [shape: f32[256,16], index: 0, kind: input, shape index: {}]
  %s1 = inlined_call_operand.hbm [shape: bf16[32,16], index: 1, kind: input, shape index: {}]
  %s2 = inlined_call_operand.hbm [shape: f32[32,1], index: 2, kind: input, shape index: {}]
  %s3 = inlined_call_operand.hbm [shape: bf16[32,32], index: 3, kind: input, shape index: {}]
  %s4 = inlined_call_operand.hbm [shape: f32[32,1], index: 4, kind: input, shape index: {}]
  %s5 = inlined_call_operand.hbm [shape: bf16[32,32], index: 5, kind: input, shape index: {}]
  %s6 = inlined_call_operand.hbm [shape: f32[32,1], index: 6, kind: input, shape index: {}]
  %s7 = inlined_call_operand.hbm [shape: bf16[32,32], index: 7, kind: input, shape index: {}]
  %s8 = inlined_call_operand.hbm [shape: f32[32,1], index: 8, kind: input, shape index: {}]
  %s9 = inlined_call_operand.hbm [shape: bf16[32,32], index: 9, kind: input, shape index: {}]
  %s10 = inlined_call_operand.hbm [shape: f32[32,1], index: 10, kind: input, shape index: {}]
  %s11 = inlined_call_operand.hbm [shape: f32[32,1], index: 11, kind: input, shape index: {}]
  %s12 = inlined_call_operand.<no memory space> [shape: f32[1,1], index: 12, kind: input, shape index: {}]
  %s13 = inlined_call_operand.hbm [shape: f32[1,256], index: 13, kind: output, shape index: {}]
  %s14 = sld [smem:[#allocation0]]
  $region133: #{tpu_custom_call.1} parent=0
    _
  %s16 = ssub.s32 1, %s14
  %s17 = scalar_select 0, %s16, %s14
  %v18 = vstv %s12
  %19 = vst [vmem:[#allocation2] sm:$0x1] %v18
  $region1: #{tpu_custom_call.1} parent=0
    #allocation3 [shape = 'u8[131072]{0}', space=vmem, size = 0x20000, scoped, tag = 'input window, operand 0']
    #allocation4 [shape = 's32[2]{0}', space=sflag, size = 0x8, scoped, tag = 'scoped memory for tpu_custom_call.1']
    #allocation5 [shape = 's32[2]{0}', space=sflag, size = 0x8, scoped, tag = 'scoped memory for tpu_custom_call.1']
    #allocation6 [shape = 'u8[8192]{0}', space=vmem, size = 0x2000, scoped, tag = 'input window, operand 1, single buffered']
    #allocation7 [shape = 's32[1]{0}', space=sflag, size = 0x4, scoped, tag = 'scoped memory for tpu_custom_call.1']
    #allocation8 [shape = 'u8[16384]{0}', space=vmem, size = 0x4000, scoped, tag = 'input window, operand 2, single buffered']
    #allocation9 [shape = 'u8[8192]{0}', space=vmem, size = 0x2000, scoped, tag = 'input window, operand 3, single buffered']
    #allocation10 [shape = 's32[1]{0}', space=sflag, size = 0x4, scoped, tag = 'scoped memory for tpu_custom_call.1']
    #allocation11 [shape = 'u8[16384]{0}', space=vmem, size = 0x4000, scoped, tag = 'input window, operand 4, single buffered']
    #allocation12 [shape = 'u8[8192]{0}', space=vmem, size = 0x2000, scoped, tag = 'input window, operand 5, single buffered']
    #allocation13 [shape = 's32[1]{0}', space=sflag, size = 0x4, scoped, tag = 'scoped memory for tpu_custom_call.1']
    #allocation14 [shape = 'u8[16384]{0}', space=vmem, size = 0x4000, scoped, tag = 'input window, operand 6, single buffered']
    #allocation15 [shape = 'u8[8192]{0}', space=vmem, size = 0x2000, scoped, tag = 'input window, operand 7, single buffered']
    #allocation16 [shape = 's32[1]{0}', space=sflag, size = 0x4, scoped, tag = 'scoped memory for tpu_custom_call.1']
    #allocation17 [shape = 'u8[16384]{0}', space=vmem, size = 0x4000, scoped, tag = 'input window, operand 8, single buffered']
    #allocation18 [shape = 'u8[8192]{0}', space=vmem, size = 0x2000, scoped, tag = 'input window, operand 9, single buffered']
    #allocation19 [shape = 's32[1]{0}', space=sflag, size = 0x4, scoped, tag = 'scoped memory for tpu_custom_call.1']
    #allocation20 [shape = 'u8[16384]{0}', space=vmem, size = 0x4000, scoped, tag = 'input window, operand 10, single buffered']
    #allocation21 [shape = 'u8[16384]{0}', space=vmem, size = 0x4000, scoped, tag = 'input window, operand 11, single buffered']
    #allocation22 [shape = 's32[1]{0}', space=sflag, size = 0x4, scoped, tag = 'scoped memory for tpu_custom_call.1']
    #allocation23 [shape = 'u8[1024]{0}', space=vmem, size = 0x400, scoped, tag = 'output window, operand 0']
    %20 = vsyncpa [#allocation4], 0
    %s21 = scalar_lea.sflag [#allocation4], 1
    %22 = vsyncpa %s21, 0
    %23 = vsyncpa [#allocation7], 0
    %24 = vsyncpa [#allocation10], 0
    %25 = vsyncpa [#allocation13], 0
    %26 = vsyncpa [#allocation16], 0
    %27 = vsyncpa [#allocation19], 0
    %28 = vsyncpa [#allocation22], 0
    %29 = vsyncpa [#allocation5], 0
    %s30 = scalar_lea.sflag [#allocation5], 1
    %31 = vsyncpa %s30, 0
    loop: start=0, step=1, limit=4
    $region2: #{tpu_custom_call.1} parent=1 // loop_pre_header
      _
    $region3: #{tpu_custom_call.1} parent=1 // loop_header
      %s33 = sphi 0, %s37
      %p34 = scmp.ge.s32.totalorder %s33, 4
      %s43 = sphi 0, %s45
      %s46 = sphi 0, %s43
      %s47 = sphi 0, %s46
      %s63 = sphi 0, %s47
      %s67 = sphi 0, %s67
      %s69 = sphi 0, %s67
      %s70 = sphi 0, %s69
      %s84 = sphi 0, %s70
      %s88 = sphi 0, %s88
      %s90 = sphi 0, %s88
      %s91 = sphi 0, %s90
      %s105 = sphi 0, %s91
      %s109 = sphi 0, %s109
      %s111 = sphi 0, %s109
      %s112 = sphi 0, %s111
      %s126 = sphi 0, %s112
      %s130 = sphi 0, %s130
      %s132 = sphi 0, %s130
      %s133 = sphi 0, %s132
      %s147 = sphi 0, %s133
      %s151 = sphi 0, %s151
      %s153 = sphi 0, %s151
      %s154 = sphi 0, %s153
      %s168 = sphi 0, %s154
      %s172 = sphi 0, %s172
      %s174 = sphi 0, %s172
      %s175 = sphi 0, %s174
      %s189 = sphi 0, %s175
      %s193 = sphi 0, %s193
      %s195 = sphi 0, %s193
      %s196 = sphi 0, %s195
      %s210 = sphi 0, %s196
      %s214 = sphi 0, %s214
      %s216 = sphi 0, %s214
      %s217 = sphi 0, %s216
      %s231 = sphi 0, %s217
      %s235 = sphi 0, %s235
      %s237 = sphi 0, %s235
      %s238 = sphi 0, %s237
      %s252 = sphi 0, %s238
      %s256 = sphi 0, %s256
      %s258 = sphi 0, %s256
      %s259 = sphi 0, %s258
      %s273 = sphi 0, %s259
      %s277 = sphi 0, %s277
      %s279 = sphi 0, %s277
      %s280 = sphi 0, %s279
      %s294 = sphi 0, %s280
      %s298 = sphi 0, %s298
      %s300 = sphi 0, %s298
      %s301 = sphi 0, %s300
      %s315 = sphi 0, %s301
      %s321 = sphi 0, %s323
      %s324 = sphi 0, %s321
      %s325 = sphi 0, %s324
      %s341 = sphi 0, %s325
    $region4: #{tpu_custom_call.1} parent=1 // loop_header_branch
      %36 = sbr.rel (%p34) target = $region8
    $region5: #{tpu_custom_call.1} parent=1 // loop_body
      %s38 = ssub.s32 %s33, 1
      %s39 = ssub.s32 %s33, 2
      %s40 = sadd.s32 %s33, 1
      %s41 = ssub.s32 %s33, %s40
      %p42 = scmp.eq.s32.totalorder %s41, 0
      %s44 = sadd.s32 %s43, 1
      %s45 = scalar_select %p42, %s43, %s44
      %p48 = pneg %p42
      %p49 = scmp.eq.s32.totalorder %s33, 1
      %p50 = por %p48, %p49
      %p51 = scmp.ne.s32.totalorder %s43, %s46
      %p52 = scmp.eq.s32.totalorder %s33, 0
      %p53 = por %p51, %p52
      %p54 = scmp.ne.s32.totalorder %s43, %s46
      %p55 = scmp.eq.s32.totalorder %s38, 1
      %p56 = por %p54, %p55
      %p57 = scmp.ne.s32.totalorder %s46, %s47
      %p58 = scmp.eq.s32.totalorder %s38, 0
      %p59 = por %p57, %p58
      %p60 = scmp.ne.s32.totalorder %s46, %s47
      %p61 = scmp.eq.s32.totalorder %s39, 1
      %p62 = por %p60, %p61
      %p64 = scmp.ne.s32.totalorder %s47, %s63
      %p65 = scmp.eq.s32.totalorder %s39, 0
      %p66 = por %p64, %p65
      %s68 = sadd.s32 %s67, 1
      %p71 = scmp.eq.s32.totalorder %s33, 1
      %p72 = scmp.ne.s32.totalorder %s67, %s69
      %p73 = scmp.eq.s32.totalorder %s33, 0
      %p74 = por %p72, %p73
      %p75 = scmp.ne.s32.totalorder %s67, %s69
      %p76 = scmp.eq.s32.totalorder %s38, 1
      %p77 = por %p75, %p76
      %p78 = scmp.ne.s32.totalorder %s69, %s70
      %p79 = scmp.eq.s32.totalorder %s38, 0
      %p80 = por %p78, %p79
      %p81 = scmp.ne.s32.totalorder %s69, %s70
      %p82 = scmp.eq.s32.totalorder %s39, 1
      %p83 = por %p81, %p82
      %p85 = scmp.ne.s32.totalorder %s70, %s84
      %p86 = scmp.eq.s32.totalorder %s39, 0
      %p87 = por %p85, %p86
      %s89 = sadd.s32 %s88, 1
      %p92 = scmp.eq.s32.totalorder %s33, 1
      %p93 = scmp.ne.s32.totalorder %s88, %s90
      %p94 = scmp.eq.s32.totalorder %s33, 0
      %p95 = por %p93, %p94
      %p96 = scmp.ne.s32.totalorder %s88, %s90
      %p97 = scmp.eq.s32.totalorder %s38, 1
      %p98 = por %p96, %p97
      %p99 = scmp.ne.s32.totalorder %s90, %s91
      %p100 = scmp.eq.s32.totalorder %s38, 0
      %p101 = por %p99, %p100
      %p102 = scmp.ne.s32.totalorder %s90, %s91
      %p103 = scmp.eq.s32.totalorder %s39, 1
      %p104 = por %p102, %p103
      %p106 = scmp.ne.s32.totalorder %s91, %s105
      %p107 = scmp.eq.s32.totalorder %s39, 0
      %p108 = por %p106, %p107
      %s110 = sadd.s32 %s109, 1
      %p113 = scmp.eq.s32.totalorder %s33, 1
      %p114 = scmp.ne.s32.totalorder %s109, %s111
      %p115 = scmp.eq.s32.totalorder %s33, 0
      %p116 = por %p114, %p115
      %p117 = scmp.ne.s32.totalorder %s109, %s111
      %p118 = scmp.eq.s32.totalorder %s38, 1
      %p119 = por %p117, %p118
      %p120 = scmp.ne.s32.totalorder %s111, %s112
      %p121 = scmp.eq.s32.totalorder %s38, 0
      %p122 = por %p120, %p121
      %p123 = scmp.ne.s32.totalorder %s111, %s112
      %p124 = scmp.eq.s32.totalorder %s39, 1
      %p125 = por %p123, %p124
      %p127 = scmp.ne.s32.totalorder %s112, %s126
      %p128 = scmp.eq.s32.totalorder %s39, 0
      %p129 = por %p127, %p128
      %s131 = sadd.s32 %s130, 1
      %p134 = scmp.eq.s32.totalorder %s33, 1
      %p135 = scmp.ne.s32.totalorder %s130, %s132
      %p136 = scmp.eq.s32.totalorder %s33, 0
      %p137 = por %p135, %p136
      %p138 = scmp.ne.s32.totalorder %s130, %s132
      %p139 = scmp.eq.s32.totalorder %s38, 1
      %p140 = por %p138, %p139
      %p141 = scmp.ne.s32.totalorder %s132, %s133
      %p142 = scmp.eq.s32.totalorder %s38, 0
      %p143 = por %p141, %p142
      %p144 = scmp.ne.s32.totalorder %s132, %s133
      %p145 = scmp.eq.s32.totalorder %s39, 1
      %p146 = por %p144, %p145
      %p148 = scmp.ne.s32.totalorder %s133, %s147
      %p149 = scmp.eq.s32.totalorder %s39, 0
      %p150 = por %p148, %p149
      %s152 = sadd.s32 %s151, 1
      %p155 = scmp.eq.s32.totalorder %s33, 1
      %p156 = scmp.ne.s32.totalorder %s151, %s153
      %p157 = scmp.eq.s32.totalorder %s33, 0
      %p158 = por %p156, %p157
      %p159 = scmp.ne.s32.totalorder %s151, %s153
      %p160 = scmp.eq.s32.totalorder %s38, 1
      %p161 = por %p159, %p160
      %p162 = scmp.ne.s32.totalorder %s153, %s154
      %p163 = scmp.eq.s32.totalorder %s38, 0
      %p164 = por %p162, %p163
      %p165 = scmp.ne.s32.totalorder %s153, %s154
      %p166 = scmp.eq.s32.totalorder %s39, 1
      %p167 = por %p165, %p166
      %p169 = scmp.ne.s32.totalorder %s154, %s168
      %p170 = scmp.eq.s32.totalorder %s39, 0
      %p171 = por %p169, %p170
      %s173 = sadd.s32 %s172, 1
      %p176 = scmp.eq.s32.totalorder %s33, 1
      %p177 = scmp.ne.s32.totalorder %s172, %s174
      %p178 = scmp.eq.s32.totalorder %s33, 0
      %p179 = por %p177, %p178
      %p180 = scmp.ne.s32.totalorder %s172, %s174
      %p181 = scmp.eq.s32.totalorder %s38, 1
      %p182 = por %p180, %p181
      %p183 = scmp.ne.s32.totalorder %s174, %s175
      %p184 = scmp.eq.s32.totalorder %s38, 0
      %p185 = por %p183, %p184
      %p186 = scmp.ne.s32.totalorder %s174, %s175
      %p187 = scmp.eq.s32.totalorder %s39, 1
      %p188 = por %p186, %p187
      %p190 = scmp.ne.s32.totalorder %s175, %s189
      %p191 = scmp.eq.s32.totalorder %s39, 0
      %p192 = por %p190, %p191
      %s194 = sadd.s32 %s193, 1
      %p197 = scmp.eq.s32.totalorder %s33, 1
      %p198 = scmp.ne.s32.totalorder %s193, %s195
      %p199 = scmp.eq.s32.totalorder %s33, 0
      %p200 = por %p198, %p199
      %p201 = scmp.ne.s32.totalorder %s193, %s195
      %p202 = scmp.eq.s32.totalorder %s38, 1
      %p203 = por %p201, %p202
      %p204 = scmp.ne.s32.totalorder %s195, %s196
      %p205 = scmp.eq.s32.totalorder %s38, 0
      %p206 = por %p204, %p205
      %p207 = scmp.ne.s32.totalorder %s195, %s196
      %p208 = scmp.eq.s32.totalorder %s39, 1
      %p209 = por %p207, %p208
      %p211 = scmp.ne.s32.totalorder %s196, %s210
      %p212 = scmp.eq.s32.totalorder %s39, 0
      %p213 = por %p211, %p212
      %s215 = sadd.s32 %s214, 1
      %p218 = scmp.eq.s32.totalorder %s33, 1
      %p219 = scmp.ne.s32.totalorder %s214, %s216
      %p220 = scmp.eq.s32.totalorder %s33, 0
      %p221 = por %p219, %p220
      %p222 = scmp.ne.s32.totalorder %s214, %s216
      %p223 = scmp.eq.s32.totalorder %s38, 1
      %p224 = por %p222, %p223
      %p225 = scmp.ne.s32.totalorder %s216, %s217
      %p226 = scmp.eq.s32.totalorder %s38, 0
      %p227 = por %p225, %p226
      %p228 = scmp.ne.s32.totalorder %s216, %s217
      %p229 = scmp.eq.s32.totalorder %s39, 1
      %p230 = por %p228, %p229
      %p232 = scmp.ne.s32.totalorder %s217, %s231
      %p233 = scmp.eq.s32.totalorder %s39, 0
      %p234 = por %p232, %p233
      %s236 = sadd.s32 %s235, 1
      %p239 = scmp.eq.s32.totalorder %s33, 1
      %p240 = scmp.ne.s32.totalorder %s235, %s237
      %p241 = scmp.eq.s32.totalorder %s33, 0
      %p242 = por %p240, %p241
      %p243 = scmp.ne.s32.totalorder %s235, %s237
      %p244 = scmp.eq.s32.totalorder %s38, 1
      %p245 = por %p243, %p244
      %p246 = scmp.ne.s32.totalorder %s237, %s238
      %p247 = scmp.eq.s32.totalorder %s38, 0
      %p248 = por %p246, %p247
      %p249 = scmp.ne.s32.totalorder %s237, %s238
      %p250 = scmp.eq.s32.totalorder %s39, 1
      %p251 = por %p249, %p250
      %p253 = scmp.ne.s32.totalorder %s238, %s252
      %p254 = scmp.eq.s32.totalorder %s39, 0
      %p255 = por %p253, %p254
      %s257 = sadd.s32 %s256, 1
      %p260 = scmp.eq.s32.totalorder %s33, 1
      %p261 = scmp.ne.s32.totalorder %s256, %s258
      %p262 = scmp.eq.s32.totalorder %s33, 0
      %p263 = por %p261, %p262
      %p264 = scmp.ne.s32.totalorder %s256, %s258
      %p265 = scmp.eq.s32.totalorder %s38, 1
      %p266 = por %p264, %p265
      %p267 = scmp.ne.s32.totalorder %s258, %s259
      %p268 = scmp.eq.s32.totalorder %s38, 0
      %p269 = por %p267, %p268
      %p270 = scmp.ne.s32.totalorder %s258, %s259
      %p271 = scmp.eq.s32.totalorder %s39, 1
      %p272 = por %p270, %p271
      %p274 = scmp.ne.s32.totalorder %s259, %s273
      %p275 = scmp.eq.s32.totalorder %s39, 0
      %p276 = por %p274, %p275
      %s278 = sadd.s32 %s277, 1
      %p281 = scmp.eq.s32.totalorder %s33, 1
      %p282 = scmp.ne.s32.totalorder %s277, %s279
      %p283 = scmp.eq.s32.totalorder %s33, 0
      %p284 = por %p282, %p283
      %p285 = scmp.ne.s32.totalorder %s277, %s279
      %p286 = scmp.eq.s32.totalorder %s38, 1
      %p287 = por %p285, %p286
      %p288 = scmp.ne.s32.totalorder %s279, %s280
      %p289 = scmp.eq.s32.totalorder %s38, 0
      %p290 = por %p288, %p289
      %p291 = scmp.ne.s32.totalorder %s279, %s280
      %p292 = scmp.eq.s32.totalorder %s39, 1
      %p293 = por %p291, %p292
      %p295 = scmp.ne.s32.totalorder %s280, %s294
      %p296 = scmp.eq.s32.totalorder %s39, 0
      %p297 = por %p295, %p296
      %s299 = sadd.s32 %s298, 1
      %p302 = scmp.eq.s32.totalorder %s33, 1
      %p303 = scmp.ne.s32.totalorder %s298, %s300
      %p304 = scmp.eq.s32.totalorder %s33, 0
      %p305 = por %p303, %p304
      %p306 = scmp.ne.s32.totalorder %s298, %s300
      %p307 = scmp.eq.s32.totalorder %s38, 1
      %p308 = por %p306, %p307
      %p309 = scmp.ne.s32.totalorder %s300, %s301
      %p310 = scmp.eq.s32.totalorder %s38, 0
      %p311 = por %p309, %p310
      %p312 = scmp.ne.s32.totalorder %s300, %s301
      %p313 = scmp.eq.s32.totalorder %s39, 1
      %p314 = por %p312, %p313
      %p316 = scmp.ne.s32.totalorder %s301, %s315
      %p317 = scmp.eq.s32.totalorder %s39, 0
      %p318 = por %p316, %p317
      %s319 = ssub.s32 %s33, %s40
      %p320 = scmp.eq.s32.totalorder %s319, 0
      %s322 = sadd.s32 %s321, 1
      %s323 = scalar_select %p320, %s321, %s322
      %p326 = pneg %p320
      %p327 = scmp.eq.s32.totalorder %s33, 1
      %p328 = por %p326, %p327
      %p329 = scmp.ne.s32.totalorder %s321, %s324
      %p330 = scmp.eq.s32.totalorder %s33, 0
      %p331 = por %p329, %p330
      %p332 = scmp.ne.s32.totalorder %s321, %s324
      %p333 = scmp.eq.s32.totalorder %s38, 1
      %p334 = por %p332, %p333
      %p335 = scmp.ne.s32.totalorder %s324, %s325
      %p336 = scmp.eq.s32.totalorder %s38, 0
      %p337 = por %p335, %p336
      %p338 = scmp.ne.s32.totalorder %s324, %s325
      %p339 = scmp.eq.s32.totalorder %s39, 1
      %p340 = por %p338, %p339
      %p342 = scmp.ne.s32.totalorder %s325, %s341
      %p343 = scmp.eq.s32.totalorder %s39, 0
      %p344 = por %p342, %p343
      %p345 = scmp.le.s32.totalorder 1, %s33
      %p346 = scmp.lt.s32.totalorder %s33, 3
      %p347 = pnand %p345, %p346
      %p348 = pneg %p347
      // Predicated region
      $region9: #{tpu_custom_call.1} parent=5 // pred_check
        _
      $region10: #{tpu_custom_call.1} parent=5 // pred_check_branch
        %350 = sbr.rel (%p347) target = $region12
      $region11: #{tpu_custom_call.1} parent=5 // pred_region
        %s351 = ssub.s32 %s33, 1
        // Predicated region
        $region13: #{tpu_custom_call.1} parent=11 // pred_check
          %p352 = pneg %p80
        $region14: #{tpu_custom_call.1} parent=11 // pred_check_branch
          %354 = sbr.rel (%p352) target = $region16
        $region15: #{tpu_custom_call.1} parent=11 // pred_region
          %s356 = ssub.s32 256, 256
          %357 = vsyncadd [#allocation7], %s356
          %s358 = sshll.u32 [#allocation6], 4
          %s359 = int_to_ptr.vmem [resolvable:$true] %s358
          %364 = dma.hbm_to_vmem [thread:$0]  %s1, 256, %s359, [#allocation7], 64, 64, 4
        $region16: #{tpu_custom_call.1} parent=11 // pred_fallthru
          _
        // Predicated region
        $region17: #{tpu_custom_call.1} parent=11 // pred_check
          %p365 = pneg %p101
        $region18: #{tpu_custom_call.1} parent=11 // pred_check_branch
          %367 = sbr.rel (%p365) target = $region20
        $region19: #{tpu_custom_call.1} parent=11 // pred_region
          %s369 = ssub.s32 512, 512
          %370 = vsyncadd [#allocation7], %s369
          %s371 = sshll.u32 [#allocation8], 4
          %s372 = int_to_ptr.vmem [resolvable:$true] %s371
          %377 = dma.hbm_to_vmem [thread:$0]  %s2, 512, %s372, [#allocation7], 128, 128, 8
        $region20: #{tpu_custom_call.1} parent=11 // pred_fallthru
          _
        // Predicated region
        $region21: #{tpu_custom_call.1} parent=11 // pred_check
          %p378 = pneg %p122
        $region22: #{tpu_custom_call.1} parent=11 // pred_check_branch
          %380 = sbr.rel (%p378) target = $region24
        $region23: #{tpu_custom_call.1} parent=11 // pred_region
          %s382 = ssub.s32 256, 256
          %383 = vsyncadd [#allocation10], %s382
          %s384 = sshll.u32 [#allocation9], 4
          %s385 = int_to_ptr.vmem [resolvable:$true] %s384
          %390 = dma.hbm_to_vmem [thread:$0]  %s3, 256, %s385, [#allocation10], 64, 64, 4
        $region24: #{tpu_custom_call.1} parent=11 // pred_fallthru
          _
        // Predicated region
        $region25: #{tpu_custom_call.1} parent=11 // pred_check
          %p391 = pneg %p143
        $region26: #{tpu_custom_call.1} parent=11 // pred_check_branch
          %393 = sbr.rel (%p391) target = $region28
        $region27: #{tpu_custom_call.1} parent=11 // pred_region
          %s395 = ssub.s32 512, 512
          %396 = vsyncadd [#allocation10], %s395
          %s397 = sshll.u32 [#allocation11], 4
          %s398 = int_to_ptr.vmem [resolvable:$true] %s397
          %403 = dma.hbm_to_vmem [thread:$0]  %s4, 512, %s398, [#allocation10], 128, 128, 8
        $region28: #{tpu_custom_call.1} parent=11 // pred_fallthru
          _
        // Predicated region
        $region29: #{tpu_custom_call.1} parent=11 // pred_check
          %p404 = pneg %p164
        $region30: #{tpu_custom_call.1} parent=11 // pred_check_branch
          %406 = sbr.rel (%p404) target = $region32
        $region31: #{tpu_custom_call.1} parent=11 // pred_region
          %s408 = ssub.s32 256, 256
          %409 = vsyncadd [#allocation13], %s408
          %s410 = sshll.u32 [#allocation12], 4
          %s411 = int_to_ptr.vmem [resolvable:$true] %s410
          %416 = dma.hbm_to_vmem [thread:$0]  %s5, 256, %s411, [#allocation13], 64, 64, 4
        $region32: #{tpu_custom_call.1} parent=11 // pred_fallthru
          _
        // Predicated region
        $region33: #{tpu_custom_call.1} parent=11 // pred_check
          %p417 = pneg %p185
        $region34: #{tpu_custom_call.1} parent=11 // pred_check_branch
          %419 = sbr.rel (%p417) target = $region36
        $region35: #{tpu_custom_call.1} parent=11 // pred_region
          %s421 = ssub.s32 512, 512
          %422 = vsyncadd [#allocation13], %s421
          %s423 = sshll.u32 [#allocation14], 4
          %s424 = int_to_ptr.vmem [resolvable:$true] %s423
          %429 = dma.hbm_to_vmem [thread:$0]  %s6, 512, %s424, [#allocation13], 128, 128, 8
        $region36: #{tpu_custom_call.1} parent=11 // pred_fallthru
          _
        // Predicated region
        $region37: #{tpu_custom_call.1} parent=11 // pred_check
          %p430 = pneg %p206
        $region38: #{tpu_custom_call.1} parent=11 // pred_check_branch
          %432 = sbr.rel (%p430) target = $region40
        $region39: #{tpu_custom_call.1} parent=11 // pred_region
          %s434 = ssub.s32 256, 256
          %435 = vsyncadd [#allocation16], %s434
          %s436 = sshll.u32 [#allocation15], 4
          %s437 = int_to_ptr.vmem [resolvable:$true] %s436
          %442 = dma.hbm_to_vmem [thread:$0]  %s7, 256, %s437, [#allocation16], 64, 64, 4
        $region40: #{tpu_custom_call.1} parent=11 // pred_fallthru
          _
        // Predicated region
        $region41: #{tpu_custom_call.1} parent=11 // pred_check
          %p443 = pneg %p227
        $region42: #{tpu_custom_call.1} parent=11 // pred_check_branch
          %445 = sbr.rel (%p443) target = $region44
        $region43: #{tpu_custom_call.1} parent=11 // pred_region
          %s447 = ssub.s32 512, 512
          %448 = vsyncadd [#allocation16], %s447
          %s449 = sshll.u32 [#allocation17], 4
          %s450 = int_to_ptr.vmem [resolvable:$true] %s449
          %455 = dma.hbm_to_vmem [thread:$0]  %s8, 512, %s450, [#allocation16], 128, 128, 8
        $region44: #{tpu_custom_call.1} parent=11 // pred_fallthru
          _
        // Predicated region
        $region45: #{tpu_custom_call.1} parent=11 // pred_check
          %p456 = pneg %p248
        $region46: #{tpu_custom_call.1} parent=11 // pred_check_branch
          %458 = sbr.rel (%p456) target = $region48
        $region47: #{tpu_custom_call.1} parent=11 // pred_region
          %s460 = ssub.s32 256, 256
          %461 = vsyncadd [#allocation19], %s460
          %s462 = sshll.u32 [#allocation18], 4
          %s463 = int_to_ptr.vmem [resolvable:$true] %s462
          %468 = dma.hbm_to_vmem [thread:$0]  %s9, 256, %s463, [#allocation19], 64, 64, 4
        $region48: #{tpu_custom_call.1} parent=11 // pred_fallthru
          _
        // Predicated region
        $region49: #{tpu_custom_call.1} parent=11 // pred_check
          %p469 = pneg %p269
        $region50: #{tpu_custom_call.1} parent=11 // pred_check_branch
          %471 = sbr.rel (%p469) target = $region52
        $region51: #{tpu_custom_call.1} parent=11 // pred_region
          %s473 = ssub.s32 512, 512
          %474 = vsyncadd [#allocation19], %s473
          %s475 = sshll.u32 [#allocation20], 4
          %s476 = int_to_ptr.vmem [resolvable:$true] %s475
          %481 = dma.hbm_to_vmem [thread:$0]  %s10, 512, %s476, [#allocation19], 128, 128, 8
        $region52: #{tpu_custom_call.1} parent=11 // pred_fallthru
          _
        // Predicated region
        $region53: #{tpu_custom_call.1} parent=11 // pred_check
          %p482 = pneg %p290
        $region54: #{tpu_custom_call.1} parent=11 // pred_check_branch
          %484 = sbr.rel (%p482) target = $region56
        $region55: #{tpu_custom_call.1} parent=11 // pred_region
          %s486 = ssub.s32 512, 512
          %487 = vsyncadd [#allocation22], %s486
          %s488 = sshll.u32 [#allocation21], 4
          %s489 = int_to_ptr.vmem [resolvable:$true] %s488
          %494 = dma.hbm_to_vmem [thread:$0]  %s11, 512, %s489, [#allocation22], 128, 128, 8
        $region56: #{tpu_custom_call.1} parent=11 // pred_fallthru
          _
        // Predicated region
        $region57: #{tpu_custom_call.1} parent=11 // pred_check
          %p495 = pneg %p311
        $region58: #{tpu_custom_call.1} parent=11 // pred_check_branch
          %497 = sbr.rel (%p495) target = $region60
        $region59: #{tpu_custom_call.1} parent=11 // pred_region
          _
        $region60: #{tpu_custom_call.1} parent=11 // pred_fallthru
          _
      $region12: #{tpu_custom_call.1} parent=5 // pred_fallthru
        _
      %p498 = scmp.lt.s32.totalorder %s33, 2
      // Predicated region
      $region61: #{tpu_custom_call.1} parent=5 // pred_check
        %p499 = pneg %p498
      $region62: #{tpu_custom_call.1} parent=5 // pred_check_branch
        %501 = sbr.rel (%p499) target = $region64
      $region63: #{tpu_custom_call.1} parent=5 // pred_region
        // Predicated region
        $region65: #{tpu_custom_call.1} parent=63 // pred_check
          %p502 = pneg %p53
        $region66: #{tpu_custom_call.1} parent=63 // pred_check_branch
          %504 = sbr.rel (%p502) target = $region68
        $region67: #{tpu_custom_call.1} parent=63 // pred_region
          %s505 = sand.u32 %s43, 1
          %s506 = scalar_lea.sflag [#allocation4], %s505
          %s507 = sand.u32 %s43, 1
          %s508 = smul.addr %s507, 128
          %s509 = scalar_lea.vmem [#allocation3], %s508
          %s510 = smul.u32 16, %s33
          %s512 = ssub.s32 2048, 2048
          %513 = vsyncadd %s506, %s512
          %s514 = smul.addr %s510, 128
          %s515 = scalar_lea.hbm %s0, %s514
          %s516 = sshll.u32 %s509, 4
          %s517 = int_to_ptr.vmem [resolvable:$true] %s516
          %522 = dma.hbm_to_vmem [thread:$0]  %s515, 2048, %s517, %s506, 128, 128, 8
        $region68: #{tpu_custom_call.1} parent=63 // pred_fallthru
          _
      $region64: #{tpu_custom_call.1} parent=5 // pred_fallthru
        _
      %p523 = scmp.le.s32.totalorder 1, %s33
      %p524 = scmp.lt.s32.totalorder %s33, 3
      %p525 = pnand %p523, %p524
      %p526 = pneg %p525
      // Predicated region
      $region69: #{tpu_custom_call.1} parent=5 // pred_check
        _
      $region70: #{tpu_custom_call.1} parent=5 // pred_check_branch
        %528 = sbr.rel (%p525) target = $region72
      $region71: #{tpu_custom_call.1} parent=5 // pred_region
        %s529 = ssub.s32 %s33, 1
        %s530 = sand.u32 %s46, 1
        %s531 = scalar_lea.sflag [#allocation4], %s530
        %s532 = sand.u32 %s46, 1
        %s533 = smul.addr %s532, 128
        %s534 = scalar_lea.vmem [#allocation3], %s533
        // Predicated region
        $region73: #{tpu_custom_call.1} parent=71 // pred_check
          %p535 = pneg %p59
        $region74: #{tpu_custom_call.1} parent=71 // pred_check_branch
          %537 = sbr.rel (%p535) target = $region76
        $region75: #{tpu_custom_call.1} parent=71 // pred_region
          %538 = dma.done %s531, 2048
        $region76: #{tpu_custom_call.1} parent=71 // pred_fallthru
          _
        // Predicated region
        $region77: #{tpu_custom_call.1} parent=71 // pred_check
          %p539 = pneg %p80
        $region78: #{tpu_custom_call.1} parent=71 // pred_check_branch
          %541 = sbr.rel (%p539) target = $region80
        $region79: #{tpu_custom_call.1} parent=71 // pred_region
          %542 = dma.done [#allocation7], 256
        $region80: #{tpu_custom_call.1} parent=71 // pred_fallthru
          _
        // Predicated region
        $region81: #{tpu_custom_call.1} parent=71 // pred_check
          %p543 = pneg %p101
        $region82: #{tpu_custom_call.1} parent=71 // pred_check_branch
          %545 = sbr.rel (%p543) target = $region84
        $region83: #{tpu_custom_call.1} parent=71 // pred_region
          %546 = dma.done [#allocation7], 512
        $region84: #{tpu_custom_call.1} parent=71 // pred_fallthru
          _
        // Predicated region
        $region85: #{tpu_custom_call.1} parent=71 // pred_check
          %p547 = pneg %p122
        $region86: #{tpu_custom_call.1} parent=71 // pred_check_branch
          %549 = sbr.rel (%p547) target = $region88
        $region87: #{tpu_custom_call.1} parent=71 // pred_region
          %550 = dma.done [#allocation10], 256
        $region88: #{tpu_custom_call.1} parent=71 // pred_fallthru
          _
        // Predicated region
        $region89: #{tpu_custom_call.1} parent=71 // pred_check
          %p551 = pneg %p143
        $region90: #{tpu_custom_call.1} parent=71 // pred_check_branch
          %553 = sbr.rel (%p551) target = $region92
        $region91: #{tpu_custom_call.1} parent=71 // pred_region
          %554 = dma.done [#allocation10], 512
        $region92: #{tpu_custom_call.1} parent=71 // pred_fallthru
          _
        // Predicated region
        $region93: #{tpu_custom_call.1} parent=71 // pred_check
          %p555 = pneg %p164
        $region94: #{tpu_custom_call.1} parent=71 // pred_check_branch
          %557 = sbr.rel (%p555) target = $region96
        $region95: #{tpu_custom_call.1} parent=71 // pred_region
          %558 = dma.done [#allocation13], 256
        $region96: #{tpu_custom_call.1} parent=71 // pred_fallthru
          _
        // Predicated region
        $region97: #{tpu_custom_call.1} parent=71 // pred_check
          %p559 = pneg %p185
        $region98: #{tpu_custom_call.1} parent=71 // pred_check_branch
          %561 = sbr.rel (%p559) target = $region100
        $region99: #{tpu_custom_call.1} parent=71 // pred_region
          %562 = dma.done [#allocation13], 512
        $region100: #{tpu_custom_call.1} parent=71 // pred_fallthru
          _
        // Predicated region
        $region101: #{tpu_custom_call.1} parent=71 // pred_check
          %p563 = pneg %p206
        $region102: #{tpu_custom_call.1} parent=71 // pred_check_branch
          %565 = sbr.rel (%p563) target = $region104
        $region103: #{tpu_custom_call.1} parent=71 // pred_region
          %566 = dma.done [#allocation16], 256
        $region104: #{tpu_custom_call.1} parent=71 // pred_fallthru
          _
        // Predicated region
        $region105: #{tpu_custom_call.1} parent=71 // pred_check
          %p567 = pneg %p227
        $region106: #{tpu_custom_call.1} parent=71 // pred_check_branch
          %569 = sbr.rel (%p567) target = $region108
        $region107: #{tpu_custom_call.1} parent=71 // pred_region
          %570 = dma.done [#allocation16], 512
        $region108: #{tpu_custom_call.1} parent=71 // pred_fallthru
          _
        // Predicated region
        $region109: #{tpu_custom_call.1} parent=71 // pred_check
          %p571 = pneg %p248
        $region110: #{tpu_custom_call.1} parent=71 // pred_check_branch
          %573 = sbr.rel (%p571) target = $region112
        $region111: #{tpu_custom_call.1} parent=71 // pred_region
          %574 = dma.done [#allocation19], 256
        $region112: #{tpu_custom_call.1} parent=71 // pred_fallthru
          _
        // Predicated region
        $region113: #{tpu_custom_call.1} parent=71 // pred_check
          %p575 = pneg %p269
        $region114: #{tpu_custom_call.1} parent=71 // pred_check_branch
          %577 = sbr.rel (%p575) target = $region116
        $region115: #{tpu_custom_call.1} parent=71 // pred_region
          %578 = dma.done [#allocation19], 512
        $region116: #{tpu_custom_call.1} parent=71 // pred_fallthru
          _
        // Predicated region
        $region117: #{tpu_custom_call.1} parent=71 // pred_check
          %p579 = pneg %p290
        $region118: #{tpu_custom_call.1} parent=71 // pred_check_branch
          %581 = sbr.rel (%p579) target = $region120
        $region119: #{tpu_custom_call.1} parent=71 // pred_region
          %582 = dma.done [#allocation22], 512
        $region120: #{tpu_custom_call.1} parent=71 // pred_fallthru
          _
        %s583 = sand.u32 %s46, 1
        %s584 = scalar_lea.sflag [#allocation4], %s583
        %s585 = sand.u32 %s46, 1
        %s586 = smul.addr %s585, 128
        %s587 = scalar_lea.vmem [#allocation3], %s586
        %p588 = pneg %p59
        %p589 = pneg %p56
        %p590 = pneg %p80
        %p591 = pneg %p77
        %p592 = pneg %p101
        %p593 = pneg %p98
        %p594 = pneg %p122
        %p595 = pneg %p119
        %p596 = pneg %p143
        %p597 = pneg %p140
        %p598 = pneg %p164
        %p599 = pneg %p161
        %p600 = pneg %p185
        %p601 = pneg %p182
        %p602 = pneg %p206
        %p603 = pneg %p203
        %p604 = pneg %p227
        %p605 = pneg %p224
        %p606 = pneg %p248
        %p607 = pneg %p245
        %p608 = pneg %p269
        %p609 = pneg %p266
        %p610 = pneg %p290
        %p611 = pneg %p287
        %p612 = pneg %p311
        %p613 = pneg %p308
        %p614 = pneg %p337
        %p615 = pneg %p334
        %s616 = sand.u32 %s324, 1
        %s617 = scalar_lea.sflag [#allocation5], %s616
        %s618 = sand.u32 %s324, 1
        %s619 = scalar_lea.vmem [#allocation23], %s618
        %s620 = smul.u32 16, %s38
        %v622 = vld [vmem:[%s534] sm:$0xff]
        %v623 = vld [vmem:[%s534 + $0x8] sm:$0xff]
        %v624 = vld [vmem:[%s534 + $0x10] sm:$0xff]
        %v625 = vld [vmem:[%s534 + $0x18] sm:$0xff]
        %v626 = vld [vmem:[%s534 + $0x20] sm:$0xff]
        %v627 = vld [vmem:[%s534 + $0x28] sm:$0xff]
        %v628 = vld [vmem:[%s534 + $0x30] sm:$0xff]
        %v629 = vld [vmem:[%s534 + $0x38] sm:$0xff]
        %v630 = vld [vmem:[%s534 + $0x40] sm:$0xff]
        %v631 = vld [vmem:[%s534 + $0x48] sm:$0xff]
        %v632 = vld [vmem:[%s534 + $0x50] sm:$0xff]
        %v633 = vld [vmem:[%s534 + $0x58] sm:$0xff]
        %v634 = vld [vmem:[%s534 + $0x60] sm:$0xff]
        %v635 = vld [vmem:[%s534 + $0x68] sm:$0xff]
        %v636 = vld [vmem:[%s534 + $0x70] sm:$0xff]
        %v637 = vld [vmem:[%s534 + $0x78] sm:$0xff]
        %v638 = vpack.c.bf16 %v623, %v622
        %v639 = vpack.c.bf16 %v625, %v624
        %v640 = vpack.c.bf16 %v627, %v626
        %v641 = vpack.c.bf16 %v629, %v628
        %v642 = vpack.c.bf16 %v631, %v630
        %v643 = vpack.c.bf16 %v633, %v632
        %v644 = vpack.c.bf16 %v635, %v634
        %v645 = vpack.c.bf16 %v637, %v636
        %v646 = vld [vmem:[#allocation6] sm:$0xf]
        %v647 = vld [vmem:[#allocation6 + $0x4] sm:$0xf]
        %v648 = vld [vmem:[#allocation6 + $0x8] sm:$0xf]
        %v649 = vld [vmem:[#allocation6 + $0xc] sm:$0xf]
        %v650 = vld [vmem:[#allocation8] sm:$0xff]
        %v651 = vld [vmem:[#allocation8 + $0x8] sm:$0xff]
        %v652 = vld [vmem:[#allocation8 + $0x10] sm:$0xff]
        %v653 = vld [vmem:[#allocation8 + $0x18] sm:$0xff]
        %655 = vset.pattern.permute.xlu0 0
        %656 = vperm.xlu0 %655, %v650
        %v657 = vpop.permute.xlu0 %656
        %660 = vset.pattern.permute.xlu0 0
        %661 = vperm.xlu0 %660, %v651
        %v662 = vpop.permute.xlu0 %661
        %665 = vset.pattern.permute.xlu0 0
        %666 = vperm.xlu0 %665, %v652
        %v667 = vpop.permute.xlu0 %666
        %670 = vset.pattern.permute.xlu0 0
        %671 = vperm.xlu0 %670, %v653
        %v672 = vpop.permute.xlu0 %671
        %v678 = vunpack.c.l.b16 %v646
        %v679 = vunpack.c.l.b16 %v647
        %v680 = vunpack.c.l.b16 %v648
        %v681 = vunpack.c.l.b16 %v649
        %v682 = vpack.c.b16 %v679, %v678
        %v683 = vpack.c.b16 %v681, %v680
        %vm684 = vcmask 130048
        %v686 = vsel %vm684, %v682, 0
        %v689 = vsel %vm684, %v683, 0
        %v692 = vsel %vm684, %v638, 0
        %v695 = vsel %vm684, %v639, 0
        %v698 = vsel %vm684, %v640, 0
        %v701 = vsel %vm684, %v641, 0
        %v704 = vsel %vm684, %v642, 0
        %v707 = vsel %vm684, %v643, 0
        %v710 = vsel %vm684, %v644, 0
        %v713 = vsel %vm684, %v645, 0
        %715 = vmatprep.subr.bf16.mxu0 0
        %716 = vmatpush1.bf16.xpose.msra.mxu0 %v692
        %717 = vmatprep.subr.bf16.mxu0 0
        %718 = vmatpush1.bf16.xpose.msra.mxu0 %v695
        %719 = vmatprep.subr.bf16.mxu0 0
        %720 = vmatpush1.bf16.xpose.msra.mxu0 %v698
        %721 = vmatprep.subr.bf16.mxu0 0
        %722 = vmatpush1.bf16.xpose.msra.mxu0 %v701
        %723 = vmatprep.subr.bf16.mxu0 0
        %724 = vmatpush1.bf16.xpose.msra.mxu0 %v704
        %725 = vmatprep.subr.bf16.mxu0 0
        %726 = vmatpush1.bf16.xpose.msra.mxu0 %v707
        %727 = vmatprep.subr.bf16.mxu0 0
        %728 = vmatpush1.bf16.xpose.msra.mxu0 %v710
        %729 = vmatprep.subr.bf16.mxu0 0
        %730 = vmatpush1.bf16.xpose.msra.mxu0 %v713
        %731 = vmatprep.subr.bf16.mxu0 0
        %732 = vmatpush1.bf16.xpose.msra.mxu0 0
        %733 = vmatprep.subr.bf16.mxu0 0
        %734 = vmatpush1.bf16.xpose.msra.mxu0 0
        %735 = vmatprep.subr.bf16.mxu0 0
        %736 = vmatpush1.bf16.xpose.msra.mxu0 0
        %737 = vmatprep.subr.bf16.mxu0 0
        %738 = vmatpush1.bf16.xpose.msra.mxu0 0
        %739 = vmatprep.subr.bf16.mxu0 0
        %740 = vmatpush1.bf16.xpose.msra.mxu0 0
        %741 = vmatprep.subr.bf16.mxu0 0
        %742 = vmatpush1.bf16.xpose.msra.mxu0 0
        %743 = vmatprep.subr.bf16.mxu0 0
        %744 = vmatpush1.bf16.xpose.msra.mxu0 0
        %745 = vmatprep.subr.bf16.mxu0 0
        %746 = vmatpush1.bf16.xpose.msra.mxu0 0
        %747 = vmatprep.mubr.bf16.mxu0 0
        %748 = vmatmul.mubr.bf16.gmra.mrb[0].mxu0 %v686
        %v749 = vpop.f32.mrb[0].mxu0
        %v750 = vadd.f32 %v657, %v749
        %v751 = vpop.f32.mrb[0].mxu0
        %v752 = vpop.f32.mrb[0].mxu0
        %v753 = vadd.f32 %v662, %v752
        %v754 = vpop.f32.mrb[0].mxu0
        %755 = vmatprep.mubr.bf16.mxu0 0
        %756 = vmatmul.mubr.bf16.gmra.mrb[0].mxu0 %v689
        %v757 = vpop.f32.mrb[0].mxu0
        %v758 = vadd.f32 %v667, %v757
        %v759 = vpop.f32.mrb[0].mxu0
        %v760 = vpop.f32.mrb[0].mxu0
        %v761 = vadd.f32 %v672, %v760
        %v762 = vpop.f32.mrb[0].mxu0
        %763 = vdwg.mxu0
        %v764 = vmax.f32 %v750, 0.0
        %v765 = vmax.f32 %v753, 0.0
        %v766 = vmax.f32 %v758, 0.0
        %v767 = vmax.f32 %v761, 0.0
        %v768 = vpack.c.bf16 %v765, %v764
        %v769 = vpack.c.bf16 %v767, %v766
        %v770 = vld [vmem:[#allocation9] sm:$0xf]
        %v771 = vld [vmem:[#allocation9 + $0x4] sm:$0xf]
        %v772 = vld [vmem:[#allocation9 + $0x8] sm:$0xf]
        %v773 = vld [vmem:[#allocation9 + $0xc] sm:$0xf]
        %v774 = vld [vmem:[#allocation11] sm:$0xff]
        %v775 = vld [vmem:[#allocation11 + $0x8] sm:$0xff]
        %v776 = vld [vmem:[#allocation11 + $0x10] sm:$0xff]
        %v777 = vld [vmem:[#allocation11 + $0x18] sm:$0xff]
        %779 = vset.pattern.permute.xlu0 0
        %780 = vperm.xlu0 %779, %v774
        %v781 = vpop.permute.xlu0 %780
        %784 = vset.pattern.permute.xlu0 0
        %785 = vperm.xlu0 %784, %v775
        %v786 = vpop.permute.xlu0 %785
        %789 = vset.pattern.permute.xlu0 0
        %790 = vperm.xlu0 %789, %v776
        %v791 = vpop.permute.xlu0 %790
        %794 = vset.pattern.permute.xlu0 0
        %795 = vperm.xlu0 %794, %v777
        %v796 = vpop.permute.xlu0 %795
        %v802 = vunpack.c.l.b16 %v770
        %v803 = vunpack.c.l.b16 %v771
        %v804 = vunpack.c.l.b16 %v772
        %v805 = vunpack.c.l.b16 %v773
        %v806 = vpack.c.b16 %v803, %v802
        %v807 = vpack.c.b16 %v805, %v804
        %vm808 = vcmask 261120
        %v810 = vsel %vm808, %v806, 0
        %v813 = vsel %vm808, %v807, 0
        %815 = vmatprep.subr.bf16.mxu0 0
        %816 = vmatpush1.bf16.msra.mxu0 %v768
        %817 = vmatprep.subr.bf16.mxu0 0
        %818 = vmatpush1.bf16.msra.mxu0 %v769
        %819 = vmatprep.subr.bf16.mxu0 0
        %820 = vmatpush1.bf16.msra.mxu0 0
        %821 = vmatprep.subr.bf16.mxu0 0
        %822 = vmatpush1.bf16.msra.mxu0 0
        %823 = vmatprep.subr.bf16.mxu0 0
        %824 = vmatpush1.bf16.msra.mxu0 0
        %825 = vmatprep.subr.bf16.mxu0 0
        %826 = vmatpush1.bf16.msra.mxu0 0
        %827 = vmatprep.subr.bf16.mxu0 0
        %828 = vmatpush1.bf16.msra.mxu0 0
        %829 = vmatprep.subr.bf16.mxu0 0
        %830 = vmatpush1.bf16.msra.mxu0 0
        %831 = vmatprep.subr.bf16.mxu0 0
        %832 = vmatpush1.bf16.msra.mxu0 0
        %833 = vmatprep.subr.bf16.mxu0 0
        %834 = vmatpush1.bf16.msra.mxu0 0
        %835 = vmatprep.subr.bf16.mxu0 0
        %836 = vmatpush1.bf16.msra.mxu0 0
        %837 = vmatprep.subr.bf16.mxu0 0
        %838 = vmatpush1.bf16.msra.mxu0 0
        %839 = vmatprep.subr.bf16.mxu0 0
        %840 = vmatpush1.bf16.msra.mxu0 0
        %841 = vmatprep.subr.bf16.mxu0 0
        %842 = vmatpush1.bf16.msra.mxu0 0
        %843 = vmatprep.subr.bf16.mxu0 0
        %844 = vmatpush1.bf16.msra.mxu0 0
        %845 = vmatprep.subr.bf16.mxu0 0
        %846 = vmatpush1.bf16.msra.mxu0 0
        %847 = vmatprep.mubr.bf16.mxu0 0
        %848 = vmatmul.mubr.bf16.gmra.mrb[0].mxu0 %v810
        %v849 = vpop.f32.mrb[0].mxu0
        %v850 = vadd.f32 %v781, %v849
        %v851 = vpop.f32.mrb[0].mxu0
        %v852 = vpop.f32.mrb[0].mxu0
        %v853 = vadd.f32 %v786, %v852
        %v854 = vpop.f32.mrb[0].mxu0
        %855 = vmatprep.mubr.bf16.mxu0 0
        %856 = vmatmul.mubr.bf16.gmra.mrb[0].mxu0 %v813
        %v857 = vpop.f32.mrb[0].mxu0
        %v858 = vadd.f32 %v791, %v857
        %v859 = vpop.f32.mrb[0].mxu0
        %v860 = vpop.f32.mrb[0].mxu0
        %v861 = vadd.f32 %v796, %v860
        %v862 = vpop.f32.mrb[0].mxu0
        %863 = vdwg.mxu0
        %v864 = vmax.f32 %v850, 0.0
        %v865 = vmax.f32 %v853, 0.0
        %v866 = vmax.f32 %v858, 0.0
        %v867 = vmax.f32 %v861, 0.0
        %v868 = vpack.c.bf16 %v865, %v864
        %v869 = vpack.c.bf16 %v867, %v866
        %v870 = vld [vmem:[#allocation12] sm:$0xf]
        %v871 = vld [vmem:[#allocation12 + $0x4] sm:$0xf]
        %v872 = vld [vmem:[#allocation12 + $0x8] sm:$0xf]
        %v873 = vld [vmem:[#allocation12 + $0xc] sm:$0xf]
        %v874 = vld [vmem:[#allocation14] sm:$0xff]
        %v875 = vld [vmem:[#allocation14 + $0x8] sm:$0xff]
        %v876 = vld [vmem:[#allocation14 + $0x10] sm:$0xff]
        %v877 = vld [vmem:[#allocation14 + $0x18] sm:$0xff]
        %879 = vset.pattern.permute.xlu0 0
        %880 = vperm.xlu0 %879, %v874
        %v881 = vpop.permute.xlu0 %880
        %884 = vset.pattern.permute.xlu0 0
        %885 = vperm.xlu0 %884, %v875
        %v886 = vpop.permute.xlu0 %885
        %889 = vset.pattern.permute.xlu0 0
        %890 = vperm.xlu0 %889, %v876
        %v891 = vpop.permute.xlu0 %890
        %894 = vset.pattern.permute.xlu0 0
        %895 = vperm.xlu0 %894, %v877
        %v896 = vpop.permute.xlu0 %895
        %v902 = vunpack.c.l.b16 %v870
        %v903 = vunpack.c.l.b16 %v871
        %v904 = vunpack.c.l.b16 %v872
        %v905 = vunpack.c.l.b16 %v873
        %v906 = vpack.c.b16 %v903, %v902
        %v907 = vpack.c.b16 %v905, %v904
        %v909 = vsel %vm808, %v906, 0
        %v912 = vsel %vm808, %v907, 0
        %914 = vmatprep.subr.bf16.mxu0 0
        %915 = vmatpush1.bf16.msra.mxu0 %v868
        %916 = vmatprep.subr.bf16.mxu0 0
        %917 = vmatpush1.bf16.msra.mxu0 %v869
        %918 = vmatprep.subr.bf16.mxu0 0
        %919 = vmatpush1.bf16.msra.mxu0 0
        %920 = vmatprep.subr.bf16.mxu0 0
        %921 = vmatpush1.bf16.msra.mxu0 0
        %922 = vmatprep.subr.bf16.mxu0 0
        %923 = vmatpush1.bf16.msra.mxu0 0
        %924 = vmatprep.subr.bf16.mxu0 0
        %925 = vmatpush1.bf16.msra.mxu0 0
        %926 = vmatprep.subr.bf16.mxu0 0
        %927 = vmatpush1.bf16.msra.mxu0 0
        %928 = vmatprep.subr.bf16.mxu0 0
        %929 = vmatpush1.bf16.msra.mxu0 0
        %930 = vmatprep.subr.bf16.mxu0 0
        %931 = vmatpush1.bf16.msra.mxu0 0
        %932 = vmatprep.subr.bf16.mxu0 0
        %933 = vmatpush1.bf16.msra.mxu0 0
        %934 = vmatprep.subr.bf16.mxu0 0
        %935 = vmatpush1.bf16.msra.mxu0 0
        %936 = vmatprep.subr.bf16.mxu0 0
        %937 = vmatpush1.bf16.msra.mxu0 0
        %938 = vmatprep.subr.bf16.mxu0 0
        %939 = vmatpush1.bf16.msra.mxu0 0
        %940 = vmatprep.subr.bf16.mxu0 0
        %941 = vmatpush1.bf16.msra.mxu0 0
        %942 = vmatprep.subr.bf16.mxu0 0
        %943 = vmatpush1.bf16.msra.mxu0 0
        %944 = vmatprep.subr.bf16.mxu0 0
        %945 = vmatpush1.bf16.msra.mxu0 0
        %946 = vmatprep.mubr.bf16.mxu0 0
        %947 = vmatmul.mubr.bf16.gmra.mrb[0].mxu0 %v909
        %v948 = vpop.f32.mrb[0].mxu0
        %v949 = vadd.f32 %v881, %v948
        %v950 = vpop.f32.mrb[0].mxu0
        %v951 = vpop.f32.mrb[0].mxu0
        %v952 = vadd.f32 %v886, %v951
        %v953 = vpop.f32.mrb[0].mxu0
        %954 = vmatprep.mubr.bf16.mxu0 0
        %955 = vmatmul.mubr.bf16.gmra.mrb[0].mxu0 %v912
        %v956 = vpop.f32.mrb[0].mxu0
        %v957 = vadd.f32 %v891, %v956
        %v958 = vpop.f32.mrb[0].mxu0
        %v959 = vpop.f32.mrb[0].mxu0
        %v960 = vadd.f32 %v896, %v959
        %v961 = vpop.f32.mrb[0].mxu0
        %962 = vdwg.mxu0
        %v963 = vmax.f32 %v949, 0.0
        %v964 = vmax.f32 %v952, 0.0
        %v965 = vmax.f32 %v957, 0.0
        %v966 = vmax.f32 %v960, 0.0
        %v967 = vpack.c.bf16 %v964, %v963
        %v968 = vpack.c.bf16 %v966, %v965
        %v969 = vld [vmem:[#allocation15] sm:$0xf]
        %v970 = vld [vmem:[#allocation15 + $0x4] sm:$0xf]
        %v971 = vld [vmem:[#allocation15 + $0x8] sm:$0xf]
        %v972 = vld [vmem:[#allocation15 + $0xc] sm:$0xf]
        %v973 = vld [vmem:[#allocation17] sm:$0xff]
        %v974 = vld [vmem:[#allocation17 + $0x8] sm:$0xff]
        %v975 = vld [vmem:[#allocation17 + $0x10] sm:$0xff]
        %v976 = vld [vmem:[#allocation17 + $0x18] sm:$0xff]
        %978 = vset.pattern.permute.xlu0 0
        %979 = vperm.xlu0 %978, %v973
        %v980 = vpop.permute.xlu0 %979
        %983 = vset.pattern.permute.xlu0 0
        %984 = vperm.xlu0 %983, %v974
        %v985 = vpop.permute.xlu0 %984
        %988 = vset.pattern.permute.xlu0 0
        %989 = vperm.xlu0 %988, %v975
        %v990 = vpop.permute.xlu0 %989
        %993 = vset.pattern.permute.xlu0 0
        %994 = vperm.xlu0 %993, %v976
        %v995 = vpop.permute.xlu0 %994
        %v1001 = vunpack.c.l.b16 %v969
        %v1002 = vunpack.c.l.b16 %v970
        %v1003 = vunpack.c.l.b16 %v971
        %v1004 = vunpack.c.l.b16 %v972
        %v1005 = vpack.c.b16 %v1002, %v1001
        %v1006 = vpack.c.b16 %v1004, %v1003
        %v1008 = vsel %vm808, %v1005, 0
        %v1011 = vsel %vm808, %v1006, 0
        %1013 = vmatprep.subr.bf16.mxu0 0
        %1014 = vmatpush1.bf16.msra.mxu0 %v967
        %1015 = vmatprep.subr.bf16.mxu0 0
        %1016 = vmatpush1.bf16.msra.mxu0 %v968
        %1017 = vmatprep.subr.bf16.mxu0 0
        %1018 = vmatpush1.bf16.msra.mxu0 0
        %1019 = vmatprep.subr.bf16.mxu0 0
        %1020 = vmatpush1.bf16.msra.mxu0 0
        %1021 = vmatprep.subr.bf16.mxu0 0
        %1022 = vmatpush1.bf16.msra.mxu0 0
        %1023 = vmatprep.subr.bf16.mxu0 0
        %1024 = vmatpush1.bf16.msra.mxu0 0
        %1025 = vmatprep.subr.bf16.mxu0 0
        %1026 = vmatpush1.bf16.msra.mxu0 0
        %1027 = vmatprep.subr.bf16.mxu0 0
        %1028 = vmatpush1.bf16.msra.mxu0 0
        %1029 = vmatprep.subr.bf16.mxu0 0
        %1030 = vmatpush1.bf16.msra.mxu0 0
        %1031 = vmatprep.subr.bf16.mxu0 0
        %1032 = vmatpush1.bf16.msra.mxu0 0
        %1033 = vmatprep.subr.bf16.mxu0 0
        %1034 = vmatpush1.bf16.msra.mxu0 0
        %1035 = vmatprep.subr.bf16.mxu0 0
        %1036 = vmatpush1.bf16.msra.mxu0 0
        %1037 = vmatprep.subr.bf16.mxu0 0
        %1038 = vmatpush1.bf16.msra.mxu0 0
        %1039 = vmatprep.subr.bf16.mxu0 0
        %1040 = vmatpush1.bf16.msra.mxu0 0
        %1041 = vmatprep.subr.bf16.mxu0 0
        %1042 = vmatpush1.bf16.msra.mxu0 0
        %1043 = vmatprep.subr.bf16.mxu0 0
        %1044 = vmatpush1.bf16.msra.mxu0 0
        %1045 = vmatprep.mubr.bf16.mxu0 0
        %1046 = vmatmul.mubr.bf16.gmra.mrb[0].mxu0 %v1008
        %v1047 = vpop.f32.mrb[0].mxu0
        %v1048 = vadd.f32 %v980, %v1047
        %v1049 = vpop.f32.mrb[0].mxu0
        %v1050 = vpop.f32.mrb[0].mxu0
        %v1051 = vadd.f32 %v985, %v1050
        %v1052 = vpop.f32.mrb[0].mxu0
        %1053 = vmatprep.mubr.bf16.mxu0 0
        %1054 = vmatmul.mubr.bf16.gmra.mrb[0].mxu0 %v1011
        %v1055 = vpop.f32.mrb[0].mxu0
        %v1056 = vadd.f32 %v990, %v1055
        %v1057 = vpop.f32.mrb[0].mxu0
        %v1058 = vpop.f32.mrb[0].mxu0
        %v1059 = vadd.f32 %v995, %v1058
        %v1060 = vpop.f32.mrb[0].mxu0
        %1061 = vdwg.mxu0
        %v1062 = vmax.f32 %v1048, 0.0
        %v1063 = vmax.f32 %v1051, 0.0
        %v1064 = vmax.f32 %v1056, 0.0
        %v1065 = vmax.f32 %v1059, 0.0
        %v1066 = vpack.c.bf16 %v1063, %v1062
        %v1067 = vpack.c.bf16 %v1065, %v1064
        %v1068 = vld [vmem:[#allocation18] sm:$0xf]
        %v1069 = vld [vmem:[#allocation18 + $0x4] sm:$0xf]
        %v1070 = vld [vmem:[#allocation18 + $0x8] sm:$0xf]
        %v1071 = vld [vmem:[#allocation18 + $0xc] sm:$0xf]
        %v1072 = vld [vmem:[#allocation20] sm:$0xff]
        %v1073 = vld [vmem:[#allocation20 + $0x8] sm:$0xff]
        %v1074 = vld [vmem:[#allocation20 + $0x10] sm:$0xff]
        %v1075 = vld [vmem:[#allocation20 + $0x18] sm:$0xff]
        %1077 = vset.pattern.permute.xlu0 0
        %1078 = vperm.xlu0 %1077, %v1072
        %v1079 = vpop.permute.xlu0 %1078
        %1082 = vset.pattern.permute.xlu0 0
        %1083 = vperm.xlu0 %1082, %v1073
        %v1084 = vpop.permute.xlu0 %1083
        %1087 = vset.pattern.permute.xlu0 0
        %1088 = vperm.xlu0 %1087, %v1074
        %v1089 = vpop.permute.xlu0 %1088
        %1092 = vset.pattern.permute.xlu0 0
        %1093 = vperm.xlu0 %1092, %v1075
        %v1094 = vpop.permute.xlu0 %1093
        %v1100 = vunpack.c.l.b16 %v1068
        %v1101 = vunpack.c.l.b16 %v1069
        %v1102 = vunpack.c.l.b16 %v1070
        %v1103 = vunpack.c.l.b16 %v1071
        %v1104 = vpack.c.b16 %v1101, %v1100
        %v1105 = vpack.c.b16 %v1103, %v1102
        %v1107 = vsel %vm808, %v1104, 0
        %v1110 = vsel %vm808, %v1105, 0
        %1112 = vmatprep.subr.bf16.mxu0 0
        %1113 = vmatpush1.bf16.msra.mxu0 %v1066
        %1114 = vmatprep.subr.bf16.mxu0 0
        %1115 = vmatpush1.bf16.msra.mxu0 %v1067
        %1116 = vmatprep.subr.bf16.mxu0 0
        %1117 = vmatpush1.bf16.msra.mxu0 0
        %1118 = vmatprep.subr.bf16.mxu0 0
        %1119 = vmatpush1.bf16.msra.mxu0 0
        %1120 = vmatprep.subr.bf16.mxu0 0
        %1121 = vmatpush1.bf16.msra.mxu0 0
        %1122 = vmatprep.subr.bf16.mxu0 0
        %1123 = vmatpush1.bf16.msra.mxu0 0
        %1124 = vmatprep.subr.bf16.mxu0 0
        %1125 = vmatpush1.bf16.msra.mxu0 0
        %1126 = vmatprep.subr.bf16.mxu0 0
        %1127 = vmatpush1.bf16.msra.mxu0 0
        %1128 = vmatprep.subr.bf16.mxu0 0
        %1129 = vmatpush1.bf16.msra.mxu0 0
        %1130 = vmatprep.subr.bf16.mxu0 0
        %1131 = vmatpush1.bf16.msra.mxu0 0
        %1132 = vmatprep.subr.bf16.mxu0 0
        %1133 = vmatpush1.bf16.msra.mxu0 0
        %1134 = vmatprep.subr.bf16.mxu0 0
        %1135 = vmatpush1.bf16.msra.mxu0 0
        %1136 = vmatprep.subr.bf16.mxu0 0
        %1137 = vmatpush1.bf16.msra.mxu0 0
        %1138 = vmatprep.subr.bf16.mxu0 0
        %1139 = vmatpush1.bf16.msra.mxu0 0
        %1140 = vmatprep.subr.bf16.mxu0 0
        %1141 = vmatpush1.bf16.msra.mxu0 0
        %1142 = vmatprep.subr.bf16.mxu0 0
        %1143 = vmatpush1.bf16.msra.mxu0 0
        %1144 = vmatprep.mubr.bf16.mxu0 0
        %1145 = vmatmul.mubr.bf16.gmra.mrb[0].mxu0 %v1107
        %v1146 = vpop.f32.mrb[0].mxu0
        %v1147 = vadd.f32 %v1079, %v1146
        %v1148 = vpop.f32.mrb[0].mxu0
        %v1149 = vpop.f32.mrb[0].mxu0
        %v1150 = vadd.f32 %v1084, %v1149
        %v1151 = vpop.f32.mrb[0].mxu0
        %1152 = vmatprep.mubr.bf16.mxu0 0
        %1153 = vmatmul.mubr.bf16.gmra.mrb[0].mxu0 %v1110
        %v1154 = vpop.f32.mrb[0].mxu0
        %v1155 = vadd.f32 %v1089, %v1154
        %v1156 = vpop.f32.mrb[0].mxu0
        %v1157 = vpop.f32.mrb[0].mxu0
        %v1158 = vadd.f32 %v1094, %v1157
        %v1159 = vpop.f32.mrb[0].mxu0
        %1160 = vdwg.mxu0
        %v1161 = vmax.f32 %v1147, 0.0
        %v1162 = vmax.f32 %v1150, 0.0
        %v1163 = vmax.f32 %v1155, 0.0
        %v1164 = vmax.f32 %v1158, 0.0
        %v1165 = vld [vmem:[#allocation21] sm:$0xff]
        %v1166 = vld [vmem:[#allocation21 + $0x8] sm:$0xff]
        %v1167 = vld [vmem:[#allocation21 + $0x10] sm:$0xff]
        %v1168 = vld [vmem:[#allocation21 + $0x18] sm:$0xff]
        %1170 = vset.pattern.permute.xlu0 0
        %1171 = vperm.xlu0 %1170, %v1165
        %v1172 = vpop.permute.xlu0 %1171
        %1175 = vset.pattern.permute.xlu0 0
        %1176 = vperm.xlu0 %1175, %v1166
        %v1177 = vpop.permute.xlu0 %1176
        %1180 = vset.pattern.permute.xlu0 0
        %1181 = vperm.xlu0 %1180, %v1167
        %v1182 = vpop.permute.xlu0 %1181
        %1185 = vset.pattern.permute.xlu0 0
        %1186 = vperm.xlu0 %1185, %v1168
        %v1187 = vpop.permute.xlu0 %1186
        %v1189 = vmul.f32 %v1161, %v1172
        %v1190 = vmul.f32 %v1162, %v1177
        %v1191 = vmul.f32 %v1163, %v1182
        %v1192 = vmul.f32 %v1164, %v1187
        %v1193 = vadd.f32 %v1189, %v1190
        %v1194 = vadd.f32 %v1193, %v1191
        %v1195 = vadd.f32 %v1194, %v1192
        %v1196 = vrot.slane %v1195, 4
        %v1197 = vadd.f32 %v1195, %v1196
        %v1198 = vrot.slane %v1197, 2
        %v1199 = vadd.f32 %v1197, %v1198
        %v1200 = vrot.slane %v1199, 1
        %v1201 = vadd.f32 %v1199, %v1200
        %v1202 = vld [vmem:[#allocation2] sm:$0x1]
        %1204 = vset.pattern.permute.xlu0 0
        %1205 = vperm.xlu0 %1204, %v1202
        %v1206 = vpop.permute.xlu0 %1205
        %v1208 = vlaneseq
        %v1209 = vshrl.u32 %v1208, 7
        %v1210 = vsub.s32 0, %v1209
        %v1211 = vrot.slane %v1206, %v1210
        %v1212 = vadd.f32 %v1201, %v1211
        %1213 = vst [vmem:[%s619] sm:$0x1] %v1212
        %s1214 = sand.u32 %s324, 1
        %s1215 = scalar_lea.sflag [#allocation5], %s1214
        %s1216 = sand.u32 %s324, 1
        %s1217 = scalar_lea.vmem [#allocation23], %s1216
        // Predicated region
        $region121: #{tpu_custom_call.1} parent=71 // pred_check
          %p1218 = pneg %p334
        $region122: #{tpu_custom_call.1} parent=71 // pred_check_branch
          %1220 = sbr.rel (%p1218) target = $region124
        $region123: #{tpu_custom_call.1} parent=71 // pred_region
          %s1222 = ssub.s32 16, 16
          %1223 = vsyncadd %s1215, %s1222
          %s1224 = smul.addr %s38, 16
          %s1225 = scalar_lea.hbm %s13, %s1224
          %s1227 = sshll.u32 %s1217, 4
          %s1228 = int_to_ptr.vmem [resolvable:$true] %s1227
          %1230 = dma.vmem_to_hbm [thread:$0]  %s1228, 16, %s1225, %s1215
        $region124: #{tpu_custom_call.1} parent=71 // pred_fallthru
          _
      $region72: #{tpu_custom_call.1} parent=5 // pred_fallthru
        _
      %p1231 = scmp.le.s32.totalorder 2, %s33
      // Predicated region
      $region125: #{tpu_custom_call.1} parent=5 // pred_check
        %p1232 = pneg %p1231
      $region126: #{tpu_custom_call.1} parent=5 // pred_check_branch
        %1234 = sbr.rel (%p1232) target = $region128
      $region127: #{tpu_custom_call.1} parent=5 // pred_region
        %s1235 = ssub.s32 %s33, 2
        // Predicated region
        $region129: #{tpu_custom_call.1} parent=127 // pred_check
          %p1236 = pneg %p340
        $region130: #{tpu_custom_call.1} parent=127 // pred_check_branch
          %1238 = sbr.rel (%p1236) target = $region132
        $region131: #{tpu_custom_call.1} parent=127 // pred_region
          %s1239 = sand.u32 %s325, 1
          %s1240 = scalar_lea.sflag [#allocation5], %s1239
          %s1241 = sand.u32 %s325, 1
          %s1242 = scalar_lea.vmem [#allocation23], %s1241
          %1243 = dma.done %s1240, 16
        $region132: #{tpu_custom_call.1} parent=127 // pred_fallthru
          _
      $region128: #{tpu_custom_call.1} parent=5 // pred_fallthru
        _
    $region6: #{tpu_custom_call.1} parent=1 // loop_footer
      %s37 = sadd.s32 1, %s33
    $region7: #{tpu_custom_call.1} parent=1 // loop_footer_branch
      %32 = sbr.rel target = $region3
    $region8: #{tpu_custom_call.1} parent=1 // loop_exit
      _
    %1244 = vsyncpa [#allocation4], 1
    %s1245 = scalar_lea.sflag [#allocation4], 1
    %1246 = vsyncpa %s1245, 1
    %1247 = vsyncpa [#allocation7], 1
    %1248 = vsyncpa [#allocation10], 1
    %1249 = vsyncpa [#allocation13], 1
    %1250 = vsyncpa [#allocation16], 1
    %1251 = vsyncpa [#allocation19], 1
    %1252 = vsyncpa [#allocation22], 1
    %1253 = vsyncpa [#allocation5], 1
    %s1254 = scalar_lea.sflag [#allocation5], 1
    %1255 = vsyncpa %s1254, 1

</llo_original>
